<compile_context>
chip_gen: v6e
topology: v6e:2x2x1
jax: 0.10.0
libtpu: 0.0.40
codegen_flags: <defaults>
</compile_context>

<pallas_src>
import functools

import jax
import jax.numpy as jnp
from jax.experimental import pallas as pl
from jax.experimental.pallas import tpu as pltpu

LANE = 128


def _round_up(n, m):
    return ((n + m - 1) // m) * m


def _default_eltwise_dtype():
    """bf16 bias-add/ReLU on chips with a bf16 VALU (v6e and newer); keep f32
    on v5e and older (no bf16 VALU there -- it would only add conversions)."""
    try:
        kind = jax.devices()[0].device_kind.lower()
    except Exception:
        return jnp.float32
    if any(t in kind for t in ("v2", "v3", "v4", "v5")):
        return jnp.float32
    return jnp.bfloat16


def _dqn_kernel(x_ref,
                w1_ref, b1_ref,
                w2_ref, b2_ref,
                w3_ref, b3_ref,
                w4_ref, b4_ref,
                wh_ref, bh_ref,
                o_ref,
                xpad_ref,
                *, eltwise_dtype):
    def layer(h_bf16, w_ref, b_ref):
        # MXU bf16 matmul with f32 accumulation; bias + ReLU in eltwise_dtype
        # (bf16 on v6e/v7x halves VALU-slot pressure); bf16 for next MXU feed.
        acc = jnp.dot(h_bf16, w_ref[...], preferred_element_type=jnp.float32)
        acc = acc.astype(eltwise_dtype) + b_ref[...].astype(eltwise_dtype)
        return jnp.maximum(acc, 0).astype(jnp.bfloat16)

    d_in = x_ref.shape[1]
    in_pad = xpad_ref.shape[1]
    if d_in == in_pad:
        h = x_ref[...].astype(jnp.bfloat16)
    else:
        # Cast + zero-pad the (Bt, d_in) input tile to a lane multiple inside
        # the kernel.  Padded weight rows are zero, so the result is unchanged.
        # (Zero every step: under megacore sharding each core owns its own
        # scratch, so a program_id==0 guard would leave one core's tail stale.)
        xpad_ref[...] = jnp.zeros_like(xpad_ref)
        xpad_ref[:, :d_in] = x_ref[...].astype(jnp.bfloat16)
        h = xpad_ref[...]

    h = layer(h, w1_ref, b1_ref)
    h = layer(h, w2_ref, b2_ref)
    h = layer(h, w3_ref, b3_ref)
    h = layer(h, w4_ref, b4_ref)
    # Head: no activation; f32 accumulate + bias; lane-dense (Bt, 128) bf16 store.
    acc = jnp.dot(h, wh_ref[...], preferred_element_type=jnp.float32)
    acc = acc + bh_ref[...].astype(jnp.float32)
    o_ref[...] = acc.astype(o_ref.dtype)


def init_params(key, inputs, outputs):
    """Deterministic synthetic weights; same shapes/init range as torch
    nn.Linear, but stored as W^T (in, out)."""
    dims = [(inputs, 512), (512, 256), (256, 128), (128, 64), (64, outputs)]
    params = []
    for (din, dout) in dims:
        key, kw, kb = jax.random.split(key, 3)
        bound = 1.0 / (din ** 0.5)
        w_t = jax.random.uniform(kw, (din, dout), jnp.float32, -bound, bound)
        b = jax.random.uniform(kb, (dout,), jnp.float32, -bound, bound)
        params.append((w_t, b))
    return params


def pack_params(params, eltwise_dtype=jnp.bfloat16):
    """Zero-pad every layer to lane-friendly widths; weights -> bf16, biases ->
    eltwise_dtype.  Padding is transparent: padded weight rows / bias entries
    are zero, so padded activation columns stay exactly zero through ReLU."""
    packed = []
    prev_pad = _round_up(params[0][0].shape[0], LANE)
    for w, b in params:
        din, dout = w.shape
        dout_pad = _round_up(dout, LANE)
        w_p = jnp.zeros((prev_pad, dout_pad), jnp.float32).at[:din, :dout].set(w)
        b_p = jnp.zeros((1, dout_pad), jnp.float32).at[0, :dout].set(b)
        packed.append((w_p.astype(jnp.bfloat16), b_p.astype(eltwise_dtype)))
        prev_pad = dout_pad
    return packed


def _choose_batch_tiling(batch, block_b):
    """Pick (tile, padded_batch, n_tiles): tile is a multiple of 8, minimizes
    padded rows, and on dual-TC chips (v7x) large batches get >=2 grid steps
    so the 'parallel' axis actually shards across both TensorCores."""
    n_tiles = pl.cdiv(batch, block_b)
    try:
        kind = jax.devices()[0].device_kind.lower()
    except Exception:
        kind = ""
    if "7" in kind and batch >= 512:   # v7x: 2 TensorCores per chip
        n_tiles = max(n_tiles, 2)
    bt = _round_up(pl.cdiv(batch, n_tiles), 8)
    return bt, bt * n_tiles, n_tiles


def dqn_forward(x, packed_params, out_dim, *, block_b=1024):
    """x: (B, d_in) f32.  packed_params: output of pack_params.
    Returns (B, out_dim) bf16 Q-values."""
    B, d_in = x.shape
    in_pad = packed_params[0][0].shape[0]
    out_pad = packed_params[-1][0].shape[1]
    eltwise_dtype = packed_params[0][1].dtype
    assert _round_up(d_in, LANE) == in_pad, "params packed for a different input dim"

    # 1024-row tiles keep per-step overhead negligible while the whole working
    # set (weights + double-buffered x/out + f32 intermediates) stays a few MB,
    # well under even v5e's 16 MiB scoped-VMEM default.  If you push block_b
    # past ~2048, set pltpu.CompilerParams(vmem_limit_bytes=...) explicitly.
    bt, bp, n_tiles = _choose_batch_tiling(B, block_b)

    # Only row-pad when needed (no column pad / cast in the wrapper).
    x_p = x if bp == B else jnp.pad(x, ((0, bp - B), (0, 0)))

    flat = []
    in_specs = [pl.BlockSpec((bt, d_in), lambda i: (i, 0))]  # x streams per tile
    for w, b in packed_params:
        flat.extend([w, b])
        # Constant block index -> weights/biases stay VMEM-resident across the
        # grid.  (pl.Buffered(1) here would trim the redundant double buffer,
        # ~0.5 MB; left at the default for portability across jax versions.)
        in_specs.append(pl.BlockSpec(w.shape, lambda i: (0, 0)))
        in_specs.append(pl.BlockSpec(b.shape, lambda i: (0, 0)))

    kernel = functools.partial(_dqn_kernel, eltwise_dtype=eltwise_dtype)

    out = pl.pallas_call(
        kernel,
        out_shape=jax.ShapeDtypeStruct((bp, out_pad), jnp.bfloat16),
        grid=(n_tiles,),
        in_specs=in_specs,
        out_specs=pl.BlockSpec((bt, out_pad), lambda i: (i, 0)),
        scratch_shapes=[pltpu.VMEM((bt, in_pad), jnp.bfloat16)],
        compiler_params=pltpu.CompilerParams(
            dimension_semantics=("parallel",)),
    )(x_p, *flat)

    return out[:B, :out_dim]


def reference_forward(x, params, eltwise_dtype=jnp.bfloat16):
    """Pure-JAX reference mirroring the kernel numerics: bf16-rounded weights
    and activations, f32 accumulation, bias+ReLU in eltwise_dtype."""
    h = x.astype(jnp.bfloat16)
    n = len(params)
    for i, (w, b) in enumerate(params):
        w_bf = w.astype(jnp.bfloat16)
        acc = jnp.dot(h.astype(jnp.float32), w_bf.astype(jnp.float32),
                      precision=jax.lax.Precision.HIGHEST)
        b_r = b.astype(eltwise_dtype)
        if i < n - 1:
            a = acc.astype(eltwise_dtype) + b_r
            h = jnp.maximum(a, 0).astype(jnp.bfloat16)
        else:
            return acc + b_r.astype(jnp.float32)


if __name__ == "__main__":
    key = jax.random.PRNGKey(0)
    batch, inputs, outputs = 4, 24, 5  # turtlebot3 laser-scan state -> 5 discrete actions

    key, kx = jax.random.split(key)
    x = jax.random.normal(kx, (batch, inputs), jnp.float32)
    params = init_params(key, inputs, outputs)

    eltwise_dtype = _default_eltwise_dtype()
    packed = pack_params(params, eltwise_dtype=eltwise_dtype)

    out = dqn_forward(x, packed, outputs)
    out = jax.block_until_ready(out)
    assert out.shape == (batch, outputs)

    ref = reference_forward(x, params, eltwise_dtype=eltwise_dtype)
    out_f = out.astype(jnp.float32)
    err = jnp.max(jnp.abs(out_f - ref))
    # bf16 output store + bf16 elementwise path => allow ~bf16-ulp tolerance.
    assert jnp.allclose(out_f, ref, atol=1e-2, rtol=1e-2), f"max abs err {err}"

    print("KERNEL_OK")
</pallas_src>

<mosaic_0001>
module attributes {stable_mosaic.version = 11 : i64} {
  func.func @_dqn_kernel(%arg0: i32, %arg1: memref<8x24xf32, #tpu.memory_space<vmem>>, %arg2: memref<128x512xbf16, #tpu.memory_space<vmem>>, %arg3: memref<1x512xbf16, #tpu.memory_space<vmem>>, %arg4: memref<512x256xbf16, #tpu.memory_space<vmem>>, %arg5: memref<1x256xbf16, #tpu.memory_space<vmem>>, %arg6: memref<256x128xbf16, #tpu.memory_space<vmem>>, %arg7: memref<1x128xbf16, #tpu.memory_space<vmem>>, %arg8: memref<128x128xbf16, #tpu.memory_space<vmem>>, %arg9: memref<1x128xbf16, #tpu.memory_space<vmem>>, %arg10: memref<128x128xbf16, #tpu.memory_space<vmem>>, %arg11: memref<1x128xbf16, #tpu.memory_space<vmem>>, %arg12: memref<8x128xbf16, #tpu.memory_space<vmem>>, %arg13: memref<8x128xbf16, #tpu.memory_space<vmem>>) attributes {dimension_semantics = [#tpu.dimension_semantics<parallel>], iteration_bounds = array<i64: 1>, scalar_prefetch = 0 : i64, scratch_operands = 1 : i64, tpu.core_type = #tpu.core_type<tc>, window_params = [{transform_indices = @transform_0, window_bounds = array<i64: 8, 24>}, {pipeline_mode = #tpu.pipeline_mode<synchronous>, transform_indices = @transform_1, window_bounds = array<i64: 128, 512>}, {pipeline_mode = #tpu.pipeline_mode<synchronous>, transform_indices = @transform_2, window_bounds = array<i64: 1, 512>}, {pipeline_mode = #tpu.pipeline_mode<synchronous>, transform_indices = @transform_3, window_bounds = array<i64: 512, 256>}, {pipeline_mode = #tpu.pipeline_mode<synchronous>, transform_indices = @transform_4, window_bounds = array<i64: 1, 256>}, {pipeline_mode = #tpu.pipeline_mode<synchronous>, transform_indices = @transform_5, window_bounds = array<i64: 256, 128>}, {pipeline_mode = #tpu.pipeline_mode<synchronous>, transform_indices = @transform_6, window_bounds = array<i64: 1, 128>}, {pipeline_mode = #tpu.pipeline_mode<synchronous>, transform_indices = @transform_7, window_bounds = array<i64: 128, 128>}, {pipeline_mode = #tpu.pipeline_mode<synchronous>, transform_indices = @transform_8, window_bounds = array<i64: 1, 128>}, {pipeline_mode = #tpu.pipeline_mode<synchronous>, transform_indices = @transform_9, window_bounds = array<i64: 128, 128>}, {pipeline_mode = #tpu.pipeline_mode<synchronous>, transform_indices = @transform_10, window_bounds = array<i64: 1, 128>}, {transform_indices = @transform_11, window_bounds = array<i64: 8, 128>}]} {
    %cst = arith.constant 0.000000e+00 : bf16
    %0 = vector.broadcast %cst : bf16 to vector<8x128xbf16>
    %c0 = arith.constant 0 : index
    %c0_0 = arith.constant 0 : index
    %1 = vector.load %arg13[%c0, %c0_0] : memref<8x128xbf16, #tpu.memory_space<vmem>>, vector<8x128xbf16>
    tpu.vector_store %arg13[%c0, %c0_0], %0 {strides = array<i32>} : memref<8x128xbf16, #tpu.memory_space<vmem>>, vector<8x128xbf16>,
    %c0_1 = arith.constant 0 : index
    %c0_2 = arith.constant 0 : index
    %2 = vector.load %arg1[%c0_1, %c0_2] : memref<8x24xf32, #tpu.memory_space<vmem>>, vector<8x24xf32>
    %3 = arith.truncf %2 : vector<8x24xf32> to vector<8x24xbf16>
    %c0_3 = arith.constant 0 : index
    %c0_4 = arith.constant 0 : index
    %4 = vector.load %arg13[%c0_3, %c0_4] : memref<8x128xbf16, #tpu.memory_space<vmem>>, vector<8x24xbf16>
    tpu.vector_store %arg13[%c0_3, %c0_4], %3 {strides = array<i32>} : memref<8x128xbf16, #tpu.memory_space<vmem>>, vector<8x24xbf16>,
    %c0_5 = arith.constant 0 : index
    %c0_6 = arith.constant 0 : index
    %5 = vector.load %arg13[%c0_5, %c0_6] : memref<8x128xbf16, #tpu.memory_space<vmem>>, vector<8x128xbf16>
    %c0_7 = arith.constant 0 : index
    %c0_8 = arith.constant 0 : index
    %6 = vector.load %arg2[%c0_7, %c0_8] : memref<128x512xbf16, #tpu.memory_space<vmem>>, vector<128x512xbf16>
    %cst_9 = arith.constant dense<0.000000e+00> : vector<8x512xf32>
    %7 = tpu.matmul %5, %6, %cst_9 {dimension_numbers = #tpu.dot_dimension_numbers<[1], [0], [0], [1], [0, 0, 1, 1], [], []>} : vector<8x128xbf16>, vector<128x512xbf16>, vector<8x512xf32> -> vector<8x512xf32>
    %8 = arith.truncf %7 : vector<8x512xf32> to vector<8x512xbf16>
    %c0_10 = arith.constant 0 : index
    %c0_11 = arith.constant 0 : index
    %9 = vector.load %arg3[%c0_10, %c0_11] : memref<1x512xbf16, #tpu.memory_space<vmem>>, vector<1x512xbf16>
    %10 = vector.broadcast %9 : vector<1x512xbf16> to vector<8x512xbf16>
    %11 = arith.addf %8, %10 : vector<8x512xbf16>
    %cst_12 = arith.constant 0.000000e+00 : bf16
    %12 = vector.broadcast %cst_12 : bf16 to vector<8x512xbf16>
    %13 = arith.maximumf %11, %12 : vector<8x512xbf16>
    %c0_13 = arith.constant 0 : index
    %c0_14 = arith.constant 0 : index
    %14 = vector.load %arg4[%c0_13, %c0_14] : memref<512x256xbf16, #tpu.memory_space<vmem>>, vector<512x256xbf16>
    %cst_15 = arith.constant dense<0.000000e+00> : vector<8x256xf32>
    %15 = tpu.matmul %13, %14, %cst_15 {dimension_numbers = #tpu.dot_dimension_numbers<[1], [0], [0], [1], [0, 0, 1, 1], [], []>} : vector<8x512xbf16>, vector<512x256xbf16>, vector<8x256xf32> -> vector<8x256xf32>
    %16 = arith.truncf %15 : vector<8x256xf32> to vector<8x256xbf16>
    %c0_16 = arith.constant 0 : index
    %c0_17 = arith.constant 0 : index
    %17 = vector.load %arg5[%c0_16, %c0_17] : memref<1x256xbf16, #tpu.memory_space<vmem>>, vector<1x256xbf16>
    %18 = vector.broadcast %17 : vector<1x256xbf16> to vector<8x256xbf16>
    %19 = arith.addf %16, %18 : vector<8x256xbf16>
    %cst_18 = arith.constant 0.000000e+00 : bf16
    %20 = vector.broadcast %cst_18 : bf16 to vector<8x256xbf16>
    %21 = arith.maximumf %19, %20 : vector<8x256xbf16>
    %c0_19 = arith.constant 0 : index
    %c0_20 = arith.constant 0 : index
    %22 = vector.load %arg6[%c0_19, %c0_20] : memref<256x128xbf16, #tpu.memory_space<vmem>>, vector<256x128xbf16>
    %cst_21 = arith.constant dense<0.000000e+00> : vector<8x128xf32>
    %23 = tpu.matmul %21, %22, %cst_21 {dimension_numbers = #tpu.dot_dimension_numbers<[1], [0], [0], [1], [0, 0, 1, 1], [], []>} : vector<8x256xbf16>, vector<256x128xbf16>, vector<8x128xf32> -> vector<8x128xf32>
    %24 = arith.truncf %23 : vector<8x128xf32> to vector<8x128xbf16>
    %c0_22 = arith.constant 0 : index
    %c0_23 = arith.constant 0 : index
    %25 = vector.load %arg7[%c0_22, %c0_23] : memref<1x128xbf16, #tpu.memory_space<vmem>>, vector<1x128xbf16>
    %26 = vector.broadcast %25 : vector<1x128xbf16> to vector<8x128xbf16>
    %27 = arith.addf %24, %26 : vector<8x128xbf16>
    %cst_24 = arith.constant 0.000000e+00 : bf16
    %28 = vector.broadcast %cst_24 : bf16 to vector<8x128xbf16>
    %29 = arith.maximumf %27, %28 : vector<8x128xbf16>
    %c0_25 = arith.constant 0 : index
    %c0_26 = arith.constant 0 : index
    %30 = vector.load %arg8[%c0_25, %c0_26] : memref<128x128xbf16, #tpu.memory_space<vmem>>, vector<128x128xbf16>
    %cst_27 = arith.constant dense<0.000000e+00> : vector<8x128xf32>
    %31 = tpu.matmul %29, %30, %cst_27 {dimension_numbers = #tpu.dot_dimension_numbers<[1], [0], [0], [1], [0, 0, 1, 1], [], []>} : vector<8x128xbf16>, vector<128x128xbf16>, vector<8x128xf32> -> vector<8x128xf32>
    %32 = arith.truncf %31 : vector<8x128xf32> to vector<8x128xbf16>
    %c0_28 = arith.constant 0 : index
    %c0_29 = arith.constant 0 : index
    %33 = vector.load %arg9[%c0_28, %c0_29] : memref<1x128xbf16, #tpu.memory_space<vmem>>, vector<1x128xbf16>
    %34 = vector.broadcast %33 : vector<1x128xbf16> to vector<8x128xbf16>
    %35 = arith.addf %32, %34 : vector<8x128xbf16>
    %cst_30 = arith.constant 0.000000e+00 : bf16
    %36 = vector.broadcast %cst_30 : bf16 to vector<8x128xbf16>
    %37 = arith.maximumf %35, %36 : vector<8x128xbf16>
    %c0_31 = arith.constant 0 : index
    %c0_32 = arith.constant 0 : index
    %38 = vector.load %arg10[%c0_31, %c0_32] : memref<128x128xbf16, #tpu.memory_space<vmem>>, vector<128x128xbf16>
    %cst_33 = arith.constant dense<0.000000e+00> : vector<8x128xf32>
    %39 = tpu.matmul %37, %38, %cst_33 {dimension_numbers = #tpu.dot_dimension_numbers<[1], [0], [0], [1], [0, 0, 1, 1], [], []>} : vector<8x128xbf16>, vector<128x128xbf16>, vector<8x128xf32> -> vector<8x128xf32>
    %c0_34 = arith.constant 0 : index
    %c0_35 = arith.constant 0 : index
    %40 = vector.load %arg11[%c0_34, %c0_35] : memref<1x128xbf16, #tpu.memory_space<vmem>>, vector<1x128xbf16>
    %41 = arith.extf %40 : vector<1x128xbf16> to vector<1x128xf32>
    %42 = vector.broadcast %41 : vector<1x128xf32> to vector<8x128xf32>
    %43 = arith.addf %39, %42 : vector<8x128xf32>
    %44 = arith.truncf %43 : vector<8x128xf32> to vector<8x128xbf16>
    %c0_36 = arith.constant 0 : index
    %c0_37 = arith.constant 0 : index
    %45 = vector.load %arg12[%c0_36, %c0_37] : memref<8x128xbf16, #tpu.memory_space<vmem>>, vector<8x128xbf16>
    tpu.vector_store %arg12[%c0_36, %c0_37], %44 {strides = array<i32>} : memref<8x128xbf16, #tpu.memory_space<vmem>>, vector<8x128xbf16>,
    return
  }
  func.func @transform_0(%arg0: i32) -> (i32, i32) {
    %c0_i32 = arith.constant 0 : i32
    %c0_i32_0 = arith.constant 0 : i32
    return %arg0, %c0_i32 : i32, i32
  }
  func.func @transform_1(%arg0: i32) -> (i32, i32) {
    %c0_i32 = arith.constant 0 : i32
    %c0_i32_0 = arith.constant 0 : i32
    %c0_i32_1 = arith.constant 0 : i32
    return %c0_i32, %c0_i32_0 : i32, i32
  }
  func.func @transform_2(%arg0: i32) -> (i32, i32) {
    %c0_i32 = arith.constant 0 : i32
    %c0_i32_0 = arith.constant 0 : i32
    %c0_i32_1 = arith.constant 0 : i32
    return %c0_i32, %c0_i32_0 : i32, i32
  }
  func.func @transform_3(%arg0: i32) -> (i32, i32) {
    %c0_i32 = arith.constant 0 : i32
    %c0_i32_0 = arith.constant 0 : i32
    %c0_i32_1 = arith.constant 0 : i32
    return %c0_i32, %c0_i32_0 : i32, i32
  }
  func.func @transform_4(%arg0: i32) -> (i32, i32) {
    %c0_i32 = arith.constant 0 : i32
    %c0_i32_0 = arith.constant 0 : i32
    %c0_i32_1 = arith.constant 0 : i32
    return %c0_i32, %c0_i32_0 : i32, i32
  }
  func.func @transform_5(%arg0: i32) -> (i32, i32) {
    %c0_i32 = arith.constant 0 : i32
    %c0_i32_0 = arith.constant 0 : i32
    %c0_i32_1 = arith.constant 0 : i32
    return %c0_i32, %c0_i32_0 : i32, i32
  }
  func.func @transform_6(%arg0: i32) -> (i32, i32) {
    %c0_i32 = arith.constant 0 : i32
    %c0_i32_0 = arith.constant 0 : i32
    %c0_i32_1 = arith.constant 0 : i32
    return %c0_i32, %c0_i32_0 : i32, i32
  }
  func.func @transform_7(%arg0: i32) -> (i32, i32) {
    %c0_i32 = arith.constant 0 : i32
    %c0_i32_0 = arith.constant 0 : i32
    %c0_i32_1 = arith.constant 0 : i32
    return %c0_i32, %c0_i32_0 : i32, i32
  }
  func.func @transform_8(%arg0: i32) -> (i32, i32) {
    %c0_i32 = arith.constant 0 : i32
    %c0_i32_0 = arith.constant 0 : i32
    %c0_i32_1 = arith.constant 0 : i32
    return %c0_i32, %c0_i32_0 : i32, i32
  }
  func.func @transform_9(%arg0: i32) -> (i32, i32) {
    %c0_i32 = arith.constant 0 : i32
    %c0_i32_0 = arith.constant 0 : i32
    %c0_i32_1 = arith.constant 0 : i32
    return %c0_i32, %c0_i32_0 : i32, i32
  }
  func.func @transform_10(%arg0: i32) -> (i32, i32) {
    %c0_i32 = arith.constant 0 : i32
    %c0_i32_0 = arith.constant 0 : i32
    %c0_i32_1 = arith.constant 0 : i32
    return %c0_i32, %c0_i32_0 : i32, i32
  }
  func.func @transform_11(%arg0: i32) -> (i32, i32) {
    %c0_i32 = arith.constant 0 : i32
    %c0_i32_0 = arith.constant 0 : i32
    return %arg0, %c0_i32 : i32, i32
  }
}

</mosaic_0001>

<llo_original>
// kernel: tpu_custom_call.1
$region0: #{tpu_custom_call.1}
  #allocation0 [shape = 'u32[]', space=smem, size = 0x4, offset = 0x4, fixed_abs, tag = 'smem constant byte address 0x4 - core index']
  #allocation1 [shape = 'u32[144,128]{1,0:T(1,128)}', space=vmem, size = 0x12000, scoped, tag = 'internal scratch']
  #allocation2 [shape = 'bf16[8,128]{1,0:T(8,128)(2,1)}', space=vmem, size = 0x800, scoped, tag = 'scratch operand']
  %s0 = inlined_call_operand.hbm [shape: f32[8,24], index: 0, kind: input, shape index: {}]
  %s1 = inlined_call_operand.hbm [shape: bf16[128,512], index: 1, kind: input, shape index: {}]
  %s2 = inlined_call_operand.hbm [shape: bf16[1,512], index: 2, kind: input, shape index: {}]
  %s3 = inlined_call_operand.hbm [shape: bf16[512,256], index: 3, kind: input, shape index: {}]
  %s4 = inlined_call_operand.vmem [shape: bf16[1,256], index: 4, kind: input, shape index: {}]
  %s5 = inlined_call_operand.hbm [shape: bf16[256,128], index: 5, kind: input, shape index: {}]
  %s6 = inlined_call_operand.vmem [shape: bf16[1,128], index: 6, kind: input, shape index: {}]
  %s7 = inlined_call_operand.hbm [shape: bf16[128,128], index: 7, kind: input, shape index: {}]
  %s8 = inlined_call_operand.vmem [shape: bf16[1,128], index: 8, kind: input, shape index: {}]
  %s9 = inlined_call_operand.hbm [shape: bf16[128,128], index: 9, kind: input, shape index: {}]
  %s10 = inlined_call_operand.vmem [shape: bf16[1,128], index: 10, kind: input, shape index: {}]
  %s11 = inlined_call_operand.hbm [shape: bf16[8,128], index: 11, kind: output, shape index: {}]
  %s12 = sld [smem:[#allocation0]]
  $region82: #{tpu_custom_call.1} parent=0
    _
  %s14 = ssub.s32 1, %s12
  %s15 = scalar_select 0, %s14, %s12
  $region1: #{tpu_custom_call.1} parent=0
    #allocation3 [shape = 'u8[4096]{0}', space=vmem, size = 0x1000, scoped, tag = 'input window, operand 0, single buffered']
    #allocation4 [shape = 's32[1]{0}', space=sflag, size = 0x4, scoped, tag = 'scoped memory for tpu_custom_call.1']
    #allocation5 [shape = 's32[1]{0}', space=sflag, size = 0x4, scoped, tag = 'scoped memory for tpu_custom_call.1']
    #allocation6 [shape = 'u8[131072]{0}', space=vmem, size = 0x20000, scoped, tag = 'input window, operand 1, single buffered']
    #allocation7 [shape = 's32[1]{0}', space=sflag, size = 0x4, scoped, tag = 'scoped memory for tpu_custom_call.1']
    #allocation8 [shape = 'u8[2048]{0}', space=vmem, size = 0x800, scoped, tag = 'input window, operand 2, single buffered']
    #allocation9 [shape = 'u8[262144]{0}', space=vmem, size = 0x40000, scoped, tag = 'input window, operand 3, single buffered']
    #allocation10 [shape = 's32[1]{0}', space=sflag, size = 0x4, scoped, tag = 'scoped memory for tpu_custom_call.1']
    #allocation11 [shape = 'u8[65536]{0}', space=vmem, size = 0x10000, scoped, tag = 'input window, operand 5, single buffered']
    #allocation12 [shape = 'u8[32768]{0}', space=vmem, size = 0x8000, scoped, tag = 'input window, operand 7, single buffered']
    #allocation13 [shape = 's32[1]{0}', space=sflag, size = 0x4, scoped, tag = 'scoped memory for tpu_custom_call.1']
    #allocation14 [shape = 'u8[32768]{0}', space=vmem, size = 0x8000, scoped, tag = 'input window, operand 9, single buffered']
    #allocation15 [shape = 'u8[2048]{0}', space=vmem, size = 0x800, scoped, tag = 'output window, operand 0, single buffered']
    %16 = vsyncpa [#allocation4], 0
    %17 = vsyncpa [#allocation7], 0
    %18 = vsyncpa [#allocation10], 0
    %19 = vsyncpa [#allocation13], 0
    %20 = vsyncpa [#allocation5], 0
    // Predicated region
    $region2: #{tpu_custom_call.1} parent=1 // pred_check
      _
    $region3: #{tpu_custom_call.1} parent=1 // pred_check_branch
      %22 = sbr.rel (0) target = $region5
    $region4: #{tpu_custom_call.1} parent=1 // pred_region
      %s24 = ssub.s32 128, 128
      %25 = vsyncadd [#allocation4], %s24
      %s27 = sshll.u32 [#allocation3], 4
      %s28 = int_to_ptr.vmem [resolvable:$true] %s27
      %30 = dma.hbm_to_vmem [thread:$0]  %s0, 128, %s28, [#allocation4]
    $region5: #{tpu_custom_call.1} parent=1 // pred_fallthru
      _
    // Predicated region
    $region6: #{tpu_custom_call.1} parent=1 // pred_check
      _
    $region7: #{tpu_custom_call.1} parent=1 // pred_check_branch
      %32 = sbr.rel (0) target = $region9
    $region8: #{tpu_custom_call.1} parent=1 // pred_region
      %s34 = ssub.s32 4096, 4096
      %35 = vsyncadd [#allocation7], %s34
      %s36 = sshll.u32 [#allocation6], 4
      %s37 = int_to_ptr.vmem [resolvable:$true] %s36
      %42 = dma.hbm_to_vmem [thread:$0]  %s1, 4096, %s37, [#allocation7], 256, 256, 16
    $region9: #{tpu_custom_call.1} parent=1 // pred_fallthru
      _
    // Predicated region
    $region10: #{tpu_custom_call.1} parent=1 // pred_check
      _
    $region11: #{tpu_custom_call.1} parent=1 // pred_check_branch
      %44 = sbr.rel (0) target = $region13
    $region12: #{tpu_custom_call.1} parent=1 // pred_region
      %s46 = ssub.s32 64, 64
      %47 = vsyncadd [#allocation7], %s46
      %s49 = sshll.u32 [#allocation8], 4
      %s50 = int_to_ptr.vmem [resolvable:$true] %s49
      %52 = dma.hbm_to_vmem [thread:$0]  %s2, 64, %s50, [#allocation7]
    $region13: #{tpu_custom_call.1} parent=1 // pred_fallthru
      _
    // Predicated region
    $region14: #{tpu_custom_call.1} parent=1 // pred_check
      _
    $region15: #{tpu_custom_call.1} parent=1 // pred_check_branch
      %54 = sbr.rel (0) target = $region17
    $region16: #{tpu_custom_call.1} parent=1 // pred_region
      %s56 = ssub.s32 8192, 8192
      %57 = vsyncadd [#allocation10], %s56
      %s58 = sshll.u32 [#allocation9], 4
      %s59 = int_to_ptr.vmem [resolvable:$true] %s58
      %64 = dma.hbm_to_vmem [thread:$0]  %s3, 8192, %s59, [#allocation10], 128, 128, 8
    $region17: #{tpu_custom_call.1} parent=1 // pred_fallthru
      _
    // Predicated region
    $region18: #{tpu_custom_call.1} parent=1 // pred_check
      _
    $region19: #{tpu_custom_call.1} parent=1 // pred_check_branch
      %66 = sbr.rel (0) target = $region21
    $region20: #{tpu_custom_call.1} parent=1 // pred_region
      _
    $region21: #{tpu_custom_call.1} parent=1 // pred_fallthru
      _
    // Predicated region
    $region22: #{tpu_custom_call.1} parent=1 // pred_check
      _
    $region23: #{tpu_custom_call.1} parent=1 // pred_check_branch
      %68 = sbr.rel (0) target = $region25
    $region24: #{tpu_custom_call.1} parent=1 // pred_region
      %s70 = ssub.s32 2048, 2048
      %71 = vsyncadd [#allocation10], %s70
      %s72 = sshll.u32 [#allocation11], 4
      %s73 = int_to_ptr.vmem [resolvable:$true] %s72
      %78 = dma.hbm_to_vmem [thread:$0]  %s5, 2048, %s73, [#allocation10], 64, 64, 4
    $region25: #{tpu_custom_call.1} parent=1 // pred_fallthru
      _
    // Predicated region
    $region26: #{tpu_custom_call.1} parent=1 // pred_check
      _
    $region27: #{tpu_custom_call.1} parent=1 // pred_check_branch
      %80 = sbr.rel (0) target = $region29
    $region28: #{tpu_custom_call.1} parent=1 // pred_region
      _
    $region29: #{tpu_custom_call.1} parent=1 // pred_fallthru
      _
    // Predicated region
    $region30: #{tpu_custom_call.1} parent=1 // pred_check
      _
    $region31: #{tpu_custom_call.1} parent=1 // pred_check_branch
      %82 = sbr.rel (0) target = $region33
    $region32: #{tpu_custom_call.1} parent=1 // pred_region
      %s84 = ssub.s32 1024, 1024
      %85 = vsyncadd [#allocation13], %s84
      %s86 = sshll.u32 [#allocation12], 4
      %s87 = int_to_ptr.vmem [resolvable:$true] %s86
      %92 = dma.hbm_to_vmem [thread:$0]  %s7, 1024, %s87, [#allocation13], 64, 64, 4
    $region33: #{tpu_custom_call.1} parent=1 // pred_fallthru
      _
    // Predicated region
    $region34: #{tpu_custom_call.1} parent=1 // pred_check
      _
    $region35: #{tpu_custom_call.1} parent=1 // pred_check_branch
      %94 = sbr.rel (0) target = $region37
    $region36: #{tpu_custom_call.1} parent=1 // pred_region
      _
    $region37: #{tpu_custom_call.1} parent=1 // pred_fallthru
      _
    // Predicated region
    $region38: #{tpu_custom_call.1} parent=1 // pred_check
      _
    $region39: #{tpu_custom_call.1} parent=1 // pred_check_branch
      %96 = sbr.rel (0) target = $region41
    $region40: #{tpu_custom_call.1} parent=1 // pred_region
      %s98 = ssub.s32 1024, 1024
      %99 = vsyncadd [#allocation13], %s98
      %s100 = sshll.u32 [#allocation14], 4
      %s101 = int_to_ptr.vmem [resolvable:$true] %s100
      %106 = dma.hbm_to_vmem [thread:$0]  %s9, 1024, %s101, [#allocation13], 64, 64, 4
    $region41: #{tpu_custom_call.1} parent=1 // pred_fallthru
      _
    // Predicated region
    $region42: #{tpu_custom_call.1} parent=1 // pred_check
      _
    $region43: #{tpu_custom_call.1} parent=1 // pred_check_branch
      %108 = sbr.rel (0) target = $region45
    $region44: #{tpu_custom_call.1} parent=1 // pred_region
      _
    $region45: #{tpu_custom_call.1} parent=1 // pred_fallthru
      _
    // Predicated region
    $region46: #{tpu_custom_call.1} parent=1 // pred_check
      _
    $region47: #{tpu_custom_call.1} parent=1 // pred_check_branch
      %110 = sbr.rel (0) target = $region49
    $region48: #{tpu_custom_call.1} parent=1 // pred_region
      %111 = dma.done [#allocation4], 128
    $region49: #{tpu_custom_call.1} parent=1 // pred_fallthru
      _
    // Predicated region
    $region50: #{tpu_custom_call.1} parent=1 // pred_check
      _
    $region51: #{tpu_custom_call.1} parent=1 // pred_check_branch
      %113 = sbr.rel (0) target = $region53
    $region52: #{tpu_custom_call.1} parent=1 // pred_region
      %114 = dma.done [#allocation7], 4096
    $region53: #{tpu_custom_call.1} parent=1 // pred_fallthru
      _
    // Predicated region
    $region54: #{tpu_custom_call.1} parent=1 // pred_check
      _
    $region55: #{tpu_custom_call.1} parent=1 // pred_check_branch
      %116 = sbr.rel (0) target = $region57
    $region56: #{tpu_custom_call.1} parent=1 // pred_region
      %117 = dma.done [#allocation7], 64
    $region57: #{tpu_custom_call.1} parent=1 // pred_fallthru
      _
    // Predicated region
    $region58: #{tpu_custom_call.1} parent=1 // pred_check
      _
    $region59: #{tpu_custom_call.1} parent=1 // pred_check_branch
      %119 = sbr.rel (0) target = $region61
    $region60: #{tpu_custom_call.1} parent=1 // pred_region
      %120 = dma.done [#allocation10], 8192
    $region61: #{tpu_custom_call.1} parent=1 // pred_fallthru
      _
    // Predicated region
    $region62: #{tpu_custom_call.1} parent=1 // pred_check
      _
    $region63: #{tpu_custom_call.1} parent=1 // pred_check_branch
      %122 = sbr.rel (0) target = $region65
    $region64: #{tpu_custom_call.1} parent=1 // pred_region
      %123 = dma.done [#allocation10], 2048
    $region65: #{tpu_custom_call.1} parent=1 // pred_fallthru
      _
    // Predicated region
    $region66: #{tpu_custom_call.1} parent=1 // pred_check
      _
    $region67: #{tpu_custom_call.1} parent=1 // pred_check_branch
      %125 = sbr.rel (0) target = $region69
    $region68: #{tpu_custom_call.1} parent=1 // pred_region
      %126 = dma.done [#allocation13], 1024
    $region69: #{tpu_custom_call.1} parent=1 // pred_fallthru
      _
    // Predicated region
    $region70: #{tpu_custom_call.1} parent=1 // pred_check
      _
    $region71: #{tpu_custom_call.1} parent=1 // pred_check_branch
      %128 = sbr.rel (0) target = $region73
    $region72: #{tpu_custom_call.1} parent=1 // pred_region
      %129 = dma.done [#allocation13], 1024
    $region73: #{tpu_custom_call.1} parent=1 // pred_fallthru
      _
    %131 = vst [vmem:[#allocation2] sm:$0xf] 0
    %v132 = vld [vmem:[#allocation3] sm:$0xff]
    %v133 = vpack.c.bf16 %v132, %v132
    %vm134 = vcmask 191488
    %135 = vst.msk [vmem:[#allocation2] sm:$0xf] %vm134, %v133
    %v136 = vld [vmem:[#allocation2] sm:$0xf]
    %v137 = vld [vmem:[#allocation6] sm:$0xff]
    %v138 = vld [vmem:[#allocation6 + $0x8] sm:$0xff]
    %v139 = vld [vmem:[#allocation6 + $0x10] sm:$0xff]
    %v140 = vld [vmem:[#allocation6 + $0x18] sm:$0xff]
    %v141 = vld [vmem:[#allocation6 + $0x20] sm:$0xff]
    %v142 = vld [vmem:[#allocation6 + $0x28] sm:$0xff]
    %v143 = vld [vmem:[#allocation6 + $0x30] sm:$0xff]
    %v144 = vld [vmem:[#allocation6 + $0x38] sm:$0xff]
    %v145 = vld [vmem:[#allocation6 + $0x40] sm:$0xff]
    %v146 = vld [vmem:[#allocation6 + $0x48] sm:$0xff]
    %v147 = vld [vmem:[#allocation6 + $0x50] sm:$0xff]
    %v148 = vld [vmem:[#allocation6 + $0x58] sm:$0xff]
    %v149 = vld [vmem:[#allocation6 + $0x60] sm:$0xff]
    %v150 = vld [vmem:[#allocation6 + $0x68] sm:$0xff]
    %v151 = vld [vmem:[#allocation6 + $0x70] sm:$0xff]
    %v152 = vld [vmem:[#allocation6 + $0x78] sm:$0xff]
    %v153 = vld [vmem:[#allocation6 + $0x80] sm:$0xff]
    %v154 = vld [vmem:[#allocation6 + $0x88] sm:$0xff]
    %v155 = vld [vmem:[#allocation6 + $0x90] sm:$0xff]
    %v156 = vld [vmem:[#allocation6 + $0x98] sm:$0xff]
    %v157 = vld [vmem:[#allocation6 + $0xa0] sm:$0xff]
    %v158 = vld [vmem:[#allocation6 + $0xa8] sm:$0xff]
    %v159 = vld [vmem:[#allocation6 + $0xb0] sm:$0xff]
    %v160 = vld [vmem:[#allocation6 + $0xb8] sm:$0xff]
    %v161 = vld [vmem:[#allocation6 + $0xc0] sm:$0xff]
    %v162 = vld [vmem:[#allocation6 + $0xc8] sm:$0xff]
    %v163 = vld [vmem:[#allocation6 + $0xd0] sm:$0xff]
    %v164 = vld [vmem:[#allocation6 + $0xd8] sm:$0xff]
    %v165 = vld [vmem:[#allocation6 + $0xe0] sm:$0xff]
    %v166 = vld [vmem:[#allocation6 + $0xe8] sm:$0xff]
    %v167 = vld [vmem:[#allocation6 + $0xf0] sm:$0xff]
    %v168 = vld [vmem:[#allocation6 + $0xf8] sm:$0xff]
    %v201 = vunpack.c.l.b16 %v137
    %v202 = vunpack.c.h.b16 %v137
    %v203 = vunpack.c.l.b16 %v138
    %v204 = vunpack.c.h.b16 %v138
    %v205 = vunpack.c.l.b16 %v139
    %v206 = vunpack.c.h.b16 %v139
    %v207 = vunpack.c.l.b16 %v140
    %v208 = vunpack.c.h.b16 %v140
    %v209 = vunpack.c.l.b16 %v141
    %v210 = vunpack.c.h.b16 %v141
    %v211 = vunpack.c.l.b16 %v142
    %v212 = vunpack.c.h.b16 %v142
    %v213 = vunpack.c.l.b16 %v143
    %v214 = vunpack.c.h.b16 %v143
    %v215 = vunpack.c.l.b16 %v144
    %v216 = vunpack.c.h.b16 %v144
    %v217 = vunpack.c.l.b16 %v145
    %v218 = vunpack.c.h.b16 %v145
    %v219 = vunpack.c.l.b16 %v146
    %v220 = vunpack.c.h.b16 %v146
    %v221 = vunpack.c.l.b16 %v147
    %v222 = vunpack.c.h.b16 %v147
    %v223 = vunpack.c.l.b16 %v148
    %v224 = vunpack.c.h.b16 %v148
    %v225 = vunpack.c.l.b16 %v149
    %v226 = vunpack.c.h.b16 %v149
    %v227 = vunpack.c.l.b16 %v150
    %v228 = vunpack.c.h.b16 %v150
    %v229 = vunpack.c.l.b16 %v151
    %v230 = vunpack.c.h.b16 %v151
    %v231 = vunpack.c.l.b16 %v152
    %v232 = vunpack.c.h.b16 %v152
    %v233 = vunpack.c.l.b16 %v153
    %v234 = vunpack.c.h.b16 %v153
    %v235 = vunpack.c.l.b16 %v154
    %v236 = vunpack.c.h.b16 %v154
    %v237 = vunpack.c.l.b16 %v155
    %v238 = vunpack.c.h.b16 %v155
    %v239 = vunpack.c.l.b16 %v156
    %v240 = vunpack.c.h.b16 %v156
    %v241 = vunpack.c.l.b16 %v157
    %v242 = vunpack.c.h.b16 %v157
    %v243 = vunpack.c.l.b16 %v158
    %v244 = vunpack.c.h.b16 %v158
    %v245 = vunpack.c.l.b16 %v159
    %v246 = vunpack.c.h.b16 %v159
    %v247 = vunpack.c.l.b16 %v160
    %v248 = vunpack.c.h.b16 %v160
    %v249 = vunpack.c.l.b16 %v161
    %v250 = vunpack.c.h.b16 %v161
    %v251 = vunpack.c.l.b16 %v162
    %v252 = vunpack.c.h.b16 %v162
    %v253 = vunpack.c.l.b16 %v163
    %v254 = vunpack.c.h.b16 %v163
    %v255 = vunpack.c.l.b16 %v164
    %v256 = vunpack.c.h.b16 %v164
    %v257 = vunpack.c.l.b16 %v165
    %v258 = vunpack.c.h.b16 %v165
    %v259 = vunpack.c.l.b16 %v166
    %v260 = vunpack.c.h.b16 %v166
    %v261 = vunpack.c.l.b16 %v167
    %v262 = vunpack.c.h.b16 %v167
    %v263 = vunpack.c.l.b16 %v168
    %v264 = vunpack.c.h.b16 %v168
    %v265 = vpack.c.b16 %v205, %v201
    %v266 = vpack.c.b16 %v206, %v202
    %v267 = vpack.c.b16 %v207, %v203
    %v268 = vpack.c.b16 %v208, %v204
    %v269 = vpack.c.b16 %v213, %v209
    %v270 = vpack.c.b16 %v214, %v210
    %v271 = vpack.c.b16 %v215, %v211
    %v272 = vpack.c.b16 %v216, %v212
    %v273 = vpack.c.b16 %v221, %v217
    %v274 = vpack.c.b16 %v222, %v218
    %v275 = vpack.c.b16 %v223, %v219
    %v276 = vpack.c.b16 %v224, %v220
    %v277 = vpack.c.b16 %v229, %v225
    %v278 = vpack.c.b16 %v230, %v226
    %v279 = vpack.c.b16 %v231, %v227
    %v280 = vpack.c.b16 %v232, %v228
    %v281 = vpack.c.b16 %v237, %v233
    %v282 = vpack.c.b16 %v238, %v234
    %v283 = vpack.c.b16 %v239, %v235
    %v284 = vpack.c.b16 %v240, %v236
    %v285 = vpack.c.b16 %v245, %v241
    %v286 = vpack.c.b16 %v246, %v242
    %v287 = vpack.c.b16 %v247, %v243
    %v288 = vpack.c.b16 %v248, %v244
    %v289 = vpack.c.b16 %v253, %v249
    %v290 = vpack.c.b16 %v254, %v250
    %v291 = vpack.c.b16 %v255, %v251
    %v292 = vpack.c.b16 %v256, %v252
    %v293 = vpack.c.b16 %v261, %v257
    %v294 = vpack.c.b16 %v262, %v258
    %v295 = vpack.c.b16 %v263, %v259
    %v296 = vpack.c.b16 %v264, %v260
    %329 = vmatprep.subr.bf16.mxu0 %v294
    %330 = vmatpush1.bf16.msra.mxu0 %v293
    %331 = vmatprep.subr.bf16.mxu0 %v290
    %332 = vmatpush1.bf16.msra.mxu0 %v289
    %333 = vmatprep.subr.bf16.mxu0 %v286
    %334 = vmatpush1.bf16.msra.mxu0 %v285
    %335 = vmatprep.subr.bf16.mxu0 %v282
    %336 = vmatpush1.bf16.msra.mxu0 %v281
    %337 = vmatprep.subr.bf16.mxu0 %v278
    %338 = vmatpush1.bf16.msra.mxu0 %v277
    %339 = vmatprep.subr.bf16.mxu0 %v274
    %340 = vmatpush1.bf16.msra.mxu0 %v273
    %341 = vmatprep.subr.bf16.mxu0 %v270
    %342 = vmatpush1.bf16.msra.mxu0 %v269
    %343 = vmatprep.subr.bf16.mxu0 %v266
    %344 = vmatpush1.bf16.msra.mxu0 %v265
    %345 = vmatprep.subr.bf16.mxu0 0
    %346 = vmatpush2.bf16.msra.mxu0 0
    %347 = vmatprep.subr.bf16.mxu0 0
    %348 = vmatpush2.bf16.msra.mxu0 0
    %349 = vmatprep.subr.bf16.mxu0 0
    %350 = vmatpush2.bf16.msra.mxu0 0
    %351 = vmatprep.subr.bf16.mxu0 0
    %352 = vmatpush2.bf16.msra.mxu0 0
    %353 = vmatprep.subr.bf16.mxu0 0
    %354 = vmatpush2.bf16.msra.mxu0 0
    %355 = vmatprep.subr.bf16.mxu0 0
    %356 = vmatpush2.bf16.msra.mxu0 0
    %357 = vmatprep.subr.bf16.mxu0 0
    %358 = vmatpush2.bf16.msra.mxu0 0
    %359 = vmatprep.subr.bf16.mxu0 0
    %360 = vmatpush2.bf16.msra.mxu0 0
    %361 = vmatprep.mubr.bf16.mxu0 0
    %362 = vmatmul.mubr.bf16.gmra.mxu0 %v136
    %v363 = vpop.f32.mrf.mxu0
    %v364 = vadd.f32 0.0, %v363
    %v365 = vpop.f32.mrf.mxu0
    %v366 = vadd.f32 0.0, %v365
    %v367 = vpop.f32.mrf.mxu0
    %v368 = vpop.f32.mrf.mxu0
    %369 = vdwg.mxu0
    %370 = vmatprep.subr.bf16.mxu0 %v296
    %371 = vmatpush1.bf16.msra.mxu0 %v295
    %372 = vmatprep.subr.bf16.mxu0 %v292
    %373 = vmatpush1.bf16.msra.mxu0 %v291
    %374 = vmatprep.subr.bf16.mxu0 %v288
    %375 = vmatpush1.bf16.msra.mxu0 %v287
    %376 = vmatprep.subr.bf16.mxu0 %v284
    %377 = vmatpush1.bf16.msra.mxu0 %v283
    %378 = vmatprep.subr.bf16.mxu0 %v280
    %379 = vmatpush1.bf16.msra.mxu0 %v279
    %380 = vmatprep.subr.bf16.mxu0 %v276
    %381 = vmatpush1.bf16.msra.mxu0 %v275
    %382 = vmatprep.subr.bf16.mxu0 %v272
    %383 = vmatpush1.bf16.msra.mxu0 %v271
    %384 = vmatprep.subr.bf16.mxu0 %v268
    %385 = vmatpush1.bf16.msra.mxu0 %v267
    %386 = vmatprep.subr.bf16.mxu0 0
    %387 = vmatpush2.bf16.msra.mxu0 0
    %388 = vmatprep.subr.bf16.mxu0 0
    %389 = vmatpush2.bf16.msra.mxu0 0
    %390 = vmatprep.subr.bf16.mxu0 0
    %391 = vmatpush2.bf16.msra.mxu0 0
    %392 = vmatprep.subr.bf16.mxu0 0
    %393 = vmatpush2.bf16.msra.mxu0 0
    %394 = vmatprep.subr.bf16.mxu0 0
    %395 = vmatpush2.bf16.msra.mxu0 0
    %396 = vmatprep.subr.bf16.mxu0 0
    %397 = vmatpush2.bf16.msra.mxu0 0
    %398 = vmatprep.subr.bf16.mxu0 0
    %399 = vmatpush2.bf16.msra.mxu0 0
    %400 = vmatprep.subr.bf16.mxu0 0
    %401 = vmatpush2.bf16.msra.mxu0 0
    %402 = vmatprep.mubr.bf16.mxu0 0
    %403 = vmatmul.mubr.bf16.gmra.mxu0 %v136
    %v404 = vpop.f32.mrf.mxu0
    %v405 = vadd.f32 0.0, %v404
    %v406 = vpop.f32.mrf.mxu0
    %v407 = vadd.f32 0.0, %v406
    %v408 = vpop.f32.mrf.mxu0
    %v409 = vpop.f32.mrf.mxu0
    %410 = vdwg.mxu0
    %v411 = vpack.c.bf16 %v364, %v364
    %v412 = vpack.c.bf16 %v366, %v366
    %v413 = vpack.c.bf16 %v405, %v405
    %v414 = vpack.c.bf16 %v407, %v407
    %v415 = vld [vmem:[#allocation8] sm:$0xf]
    %v418 = vunpack.c.l.s4 1966171168
    %v419 = vunpack.c.0.s8 %v418
    %v420 = vlaneseq
    %v421 = vshrl.u32 %v420, 7
    %v422 = vsub.s32 %v419, %v421
    %v423 = vrot.slane %v415, %v422
    %v424 = vcombine.high %v423, %v423
    %v426 = vunpack.c.l.s4 1966171168
    %v427 = vunpack.c.0.s8 %v426
    %v428 = vlaneseq
    %v429 = vshrl.u32 %v428, 7
    %v430 = vsub.s32 %v427, %v429
    %v431 = vrot.slane %v423, %v430
    %v433 = vunpack.c.l.s4 1966171168
    %v434 = vunpack.c.0.s8 %v433
    %v435 = vlaneseq
    %v436 = vshrl.u32 %v435, 7
    %v437 = vsub.s32 %v434, %v436
    %v438 = vrot.slane %v424, %v437
    %v439 = vcombine.high %v431, %v431
    %v440 = vcombine.high %v438, %v438
    %v442 = vpack.i.b16 %v431, %v431
    %v444 = vlaneseq
    %v445 = vshrl.u32 %v444, 7
    %v446 = vsub.s32 0, %v445
    %v447 = vrot.slane %v442, %v446
    %v449 = vpack.i.b16 %v438, %v438
    %v451 = vlaneseq
    %v452 = vshrl.u32 %v451, 7
    %v453 = vsub.s32 0, %v452
    %v454 = vrot.slane %v449, %v453
    %v456 = vpack.i.b16 %v439, %v439
    %v458 = vlaneseq
    %v459 = vshrl.u32 %v458, 7
    %v460 = vsub.s32 0, %v459
    %v461 = vrot.slane %v456, %v460
    %v463 = vpack.i.b16 %v440, %v440
    %v465 = vlaneseq
    %v466 = vshrl.u32 %v465, 7
    %v467 = vsub.s32 0, %v466
    %v468 = vrot.slane %v463, %v467
    %v469 = vadd.bf16 %v411, %v447
    %v470 = vadd.bf16 %v412, %v454
    %v471 = vadd.bf16 %v413, %v461
    %v472 = vadd.bf16 %v414, %v468
    %v473 = vmax.bf16 %v469, 0
    %v474 = vmax.bf16 %v470, 0
    %v475 = vmax.bf16 %v471, 0
    %v476 = vmax.bf16 %v472, 0
    %v477 = vld [vmem:[#allocation9] sm:$0xff]
    %v478 = vld [vmem:[#allocation9 + $0x8] sm:$0xff]
    %v479 = vld [vmem:[#allocation9 + $0x10] sm:$0xff]
    %v480 = vld [vmem:[#allocation9 + $0x18] sm:$0xff]
    %v481 = vld [vmem:[#allocation9 + $0x20] sm:$0xff]
    %v482 = vld [vmem:[#allocation9 + $0x28] sm:$0xff]
    %v483 = vld [vmem:[#allocation9 + $0x30] sm:$0xff]
    %v484 = vld [vmem:[#allocation9 + $0x38] sm:$0xff]
    %v485 = vld [vmem:[#allocation9 + $0x40] sm:$0xff]
    %v486 = vld [vmem:[#allocation9 + $0x48] sm:$0xff]
    %v487 = vld [vmem:[#allocation9 + $0x50] sm:$0xff]
    %v488 = vld [vmem:[#allocation9 + $0x58] sm:$0xff]
    %v489 = vld [vmem:[#allocation9 + $0x60] sm:$0xff]
    %v490 = vld [vmem:[#allocation9 + $0x68] sm:$0xff]
    %v491 = vld [vmem:[#allocation9 + $0x70] sm:$0xff]
    %v492 = vld [vmem:[#allocation9 + $0x78] sm:$0xff]
    %v493 = vld [vmem:[#allocation9 + $0x80] sm:$0xff]
    %v494 = vld [vmem:[#allocation9 + $0x88] sm:$0xff]
    %v495 = vld [vmem:[#allocation9 + $0x90] sm:$0xff]
    %v496 = vld [vmem:[#allocation9 + $0x98] sm:$0xff]
    %v497 = vld [vmem:[#allocation9 + $0xa0] sm:$0xff]
    %v498 = vld [vmem:[#allocation9 + $0xa8] sm:$0xff]
    %v499 = vld [vmem:[#allocation9 + $0xb0] sm:$0xff]
    %v500 = vld [vmem:[#allocation9 + $0xb8] sm:$0xff]
    %v501 = vld [vmem:[#allocation9 + $0xc0] sm:$0xff]
    %v502 = vld [vmem:[#allocation9 + $0xc8] sm:$0xff]
    %v503 = vld [vmem:[#allocation9 + $0xd0] sm:$0xff]
    %v504 = vld [vmem:[#allocation9 + $0xd8] sm:$0xff]
    %v505 = vld [vmem:[#allocation9 + $0xe0] sm:$0xff]
    %v506 = vld [vmem:[#allocation9 + $0xe8] sm:$0xff]
    %v507 = vld [vmem:[#allocation9 + $0xf0] sm:$0xff]
    %v508 = vld [vmem:[#allocation9 + $0xf8] sm:$0xff]
    %v509 = vld [vmem:[#allocation9 + $0x100] sm:$0xff]
    %v510 = vld [vmem:[#allocation9 + $0x108] sm:$0xff]
    %v511 = vld [vmem:[#allocation9 + $0x110] sm:$0xff]
    %v512 = vld [vmem:[#allocation9 + $0x118] sm:$0xff]
    %v513 = vld [vmem:[#allocation9 + $0x120] sm:$0xff]
    %v514 = vld [vmem:[#allocation9 + $0x128] sm:$0xff]
    %v515 = vld [vmem:[#allocation9 + $0x130] sm:$0xff]
    %v516 = vld [vmem:[#allocation9 + $0x138] sm:$0xff]
    %v517 = vld [vmem:[#allocation9 + $0x140] sm:$0xff]
    %v518 = vld [vmem:[#allocation9 + $0x148] sm:$0xff]
    %v519 = vld [vmem:[#allocation9 + $0x150] sm:$0xff]
    %v520 = vld [vmem:[#allocation9 + $0x158] sm:$0xff]
    %v521 = vld [vmem:[#allocation9 + $0x160] sm:$0xff]
    %v522 = vld [vmem:[#allocation9 + $0x168] sm:$0xff]
    %v523 = vld [vmem:[#allocation9 + $0x170] sm:$0xff]
    %v524 = vld [vmem:[#allocation9 + $0x178] sm:$0xff]
    %v525 = vld [vmem:[#allocation9 + $0x180] sm:$0xff]
    %v526 = vld [vmem:[#allocation9 + $0x188] sm:$0xff]
    %v527 = vld [vmem:[#allocation9 + $0x190] sm:$0xff]
    %v528 = vld [vmem:[#allocation9 + $0x198] sm:$0xff]
    %v529 = vld [vmem:[#allocation9 + $0x1a0] sm:$0xff]
    %v530 = vld [vmem:[#allocation9 + $0x1a8] sm:$0xff]
    %v531 = vld [vmem:[#allocation9 + $0x1b0] sm:$0xff]
    %v532 = vld [vmem:[#allocation9 + $0x1b8] sm:$0xff]
    %v533 = vld [vmem:[#allocation9 + $0x1c0] sm:$0xff]
    %v534 = vld [vmem:[#allocation9 + $0x1c8] sm:$0xff]
    %v535 = vld [vmem:[#allocation9 + $0x1d0] sm:$0xff]
    %v536 = vld [vmem:[#allocation9 + $0x1d8] sm:$0xff]
    %v537 = vld [vmem:[#allocation9 + $0x1e0] sm:$0xff]
    %v538 = vld [vmem:[#allocation9 + $0x1e8] sm:$0xff]
    %v539 = vld [vmem:[#allocation9 + $0x1f0] sm:$0xff]
    %v540 = vld [vmem:[#allocation9 + $0x1f8] sm:$0xff]
    %v605 = vunpack.c.l.b16 %v477
    %v606 = vunpack.c.h.b16 %v477
    %v607 = vunpack.c.l.b16 %v478
    %v608 = vunpack.c.h.b16 %v478
    %v609 = vunpack.c.l.b16 %v479
    %v610 = vunpack.c.h.b16 %v479
    %v611 = vunpack.c.l.b16 %v480
    %v612 = vunpack.c.h.b16 %v480
    %v613 = vunpack.c.l.b16 %v481
    %v614 = vunpack.c.h.b16 %v481
    %v615 = vunpack.c.l.b16 %v482
    %v616 = vunpack.c.h.b16 %v482
    %v617 = vunpack.c.l.b16 %v483
    %v618 = vunpack.c.h.b16 %v483
    %v619 = vunpack.c.l.b16 %v484
    %v620 = vunpack.c.h.b16 %v484
    %v621 = vunpack.c.l.b16 %v485
    %v622 = vunpack.c.h.b16 %v485
    %v623 = vunpack.c.l.b16 %v486
    %v624 = vunpack.c.h.b16 %v486
    %v625 = vunpack.c.l.b16 %v487
    %v626 = vunpack.c.h.b16 %v487
    %v627 = vunpack.c.l.b16 %v488
    %v628 = vunpack.c.h.b16 %v488
    %v629 = vunpack.c.l.b16 %v489
    %v630 = vunpack.c.h.b16 %v489
    %v631 = vunpack.c.l.b16 %v490
    %v632 = vunpack.c.h.b16 %v490
    %v633 = vunpack.c.l.b16 %v491
    %v634 = vunpack.c.h.b16 %v491
    %v635 = vunpack.c.l.b16 %v492
    %v636 = vunpack.c.h.b16 %v492
    %v637 = vunpack.c.l.b16 %v493
    %v638 = vunpack.c.h.b16 %v493
    %v639 = vunpack.c.l.b16 %v494
    %v640 = vunpack.c.h.b16 %v494
    %v641 = vunpack.c.l.b16 %v495
    %v642 = vunpack.c.h.b16 %v495
    %v643 = vunpack.c.l.b16 %v496
    %v644 = vunpack.c.h.b16 %v496
    %v645 = vunpack.c.l.b16 %v497
    %v646 = vunpack.c.h.b16 %v497
    %v647 = vunpack.c.l.b16 %v498
    %v648 = vunpack.c.h.b16 %v498
    %v649 = vunpack.c.l.b16 %v499
    %v650 = vunpack.c.h.b16 %v499
    %v651 = vunpack.c.l.b16 %v500
    %v652 = vunpack.c.h.b16 %v500
    %v653 = vunpack.c.l.b16 %v501
    %v654 = vunpack.c.h.b16 %v501
    %v655 = vunpack.c.l.b16 %v502
    %v656 = vunpack.c.h.b16 %v502
    %v657 = vunpack.c.l.b16 %v503
    %v658 = vunpack.c.h.b16 %v503
    %v659 = vunpack.c.l.b16 %v504
    %v660 = vunpack.c.h.b16 %v504
    %v661 = vunpack.c.l.b16 %v505
    %v662 = vunpack.c.h.b16 %v505
    %v663 = vunpack.c.l.b16 %v506
    %v664 = vunpack.c.h.b16 %v506
    %v665 = vunpack.c.l.b16 %v507
    %v666 = vunpack.c.h.b16 %v507
    %v667 = vunpack.c.l.b16 %v508
    %v668 = vunpack.c.h.b16 %v508
    %v669 = vunpack.c.l.b16 %v509
    %v670 = vunpack.c.h.b16 %v509
    %v671 = vunpack.c.l.b16 %v510
    %v672 = vunpack.c.h.b16 %v510
    %v673 = vunpack.c.l.b16 %v511
    %v674 = vunpack.c.h.b16 %v511
    %v675 = vunpack.c.l.b16 %v512
    %v676 = vunpack.c.h.b16 %v512
    %v677 = vunpack.c.l.b16 %v513
    %v678 = vunpack.c.h.b16 %v513
    %v679 = vunpack.c.l.b16 %v514
    %v680 = vunpack.c.h.b16 %v514
    %v681 = vunpack.c.l.b16 %v515
    %v682 = vunpack.c.h.b16 %v515
    %v683 = vunpack.c.l.b16 %v516
    %v684 = vunpack.c.h.b16 %v516
    %v685 = vunpack.c.l.b16 %v517
    %v686 = vunpack.c.h.b16 %v517
    %v687 = vunpack.c.l.b16 %v518
    %v688 = vunpack.c.h.b16 %v518
    %v689 = vunpack.c.l.b16 %v519
    %v690 = vunpack.c.h.b16 %v519
    %v691 = vunpack.c.l.b16 %v520
    %v692 = vunpack.c.h.b16 %v520
    %v693 = vunpack.c.l.b16 %v521
    %v694 = vunpack.c.h.b16 %v521
    %v695 = vunpack.c.l.b16 %v522
    %v696 = vunpack.c.h.b16 %v522
    %v697 = vunpack.c.l.b16 %v523
    %v698 = vunpack.c.h.b16 %v523
    %v699 = vunpack.c.l.b16 %v524
    %v700 = vunpack.c.h.b16 %v524
    %v701 = vunpack.c.l.b16 %v525
    %v702 = vunpack.c.h.b16 %v525
    %v703 = vunpack.c.l.b16 %v526
    %v704 = vunpack.c.h.b16 %v526
    %v705 = vunpack.c.l.b16 %v527
    %v706 = vunpack.c.h.b16 %v527
    %v707 = vunpack.c.l.b16 %v528
    %v708 = vunpack.c.h.b16 %v528
    %v709 = vunpack.c.l.b16 %v529
    %v710 = vunpack.c.h.b16 %v529
    %v711 = vunpack.c.l.b16 %v530
    %v712 = vunpack.c.h.b16 %v530
    %v713 = vunpack.c.l.b16 %v531
    %v714 = vunpack.c.h.b16 %v531
    %v715 = vunpack.c.l.b16 %v532
    %v716 = vunpack.c.h.b16 %v532
    %v717 = vunpack.c.l.b16 %v533
    %v718 = vunpack.c.h.b16 %v533
    %v719 = vunpack.c.l.b16 %v534
    %v720 = vunpack.c.h.b16 %v534
    %v721 = vunpack.c.l.b16 %v535
    %v722 = vunpack.c.h.b16 %v535
    %v723 = vunpack.c.l.b16 %v536
    %v724 = vunpack.c.h.b16 %v536
    %v725 = vunpack.c.l.b16 %v537
    %v726 = vunpack.c.h.b16 %v537
    %v727 = vunpack.c.l.b16 %v538
    %v728 = vunpack.c.h.b16 %v538
    %v729 = vunpack.c.l.b16 %v539
    %v730 = vunpack.c.h.b16 %v539
    %v731 = vunpack.c.l.b16 %v540
    %v732 = vunpack.c.h.b16 %v540
    %v733 = vpack.c.b16 %v607, %v605
    %v734 = vpack.c.b16 %v608, %v606
    %v735 = vpack.c.b16 %v611, %v609
    %v736 = vpack.c.b16 %v612, %v610
    %v737 = vpack.c.b16 %v615, %v613
    %v738 = vpack.c.b16 %v616, %v614
    %v739 = vpack.c.b16 %v619, %v617
    %v740 = vpack.c.b16 %v620, %v618
    %v741 = vpack.c.b16 %v623, %v621
    %v742 = vpack.c.b16 %v624, %v622
    %v743 = vpack.c.b16 %v627, %v625
    %v744 = vpack.c.b16 %v628, %v626
    %v745 = vpack.c.b16 %v631, %v629
    %v746 = vpack.c.b16 %v632, %v630
    %v747 = vpack.c.b16 %v635, %v633
    %v748 = vpack.c.b16 %v636, %v634
    %v749 = vpack.c.b16 %v639, %v637
    %v750 = vpack.c.b16 %v640, %v638
    %v751 = vpack.c.b16 %v643, %v641
    %v752 = vpack.c.b16 %v644, %v642
    %v753 = vpack.c.b16 %v647, %v645
    %v754 = vpack.c.b16 %v648, %v646
    %v755 = vpack.c.b16 %v651, %v649
    %v756 = vpack.c.b16 %v652, %v650
    %v757 = vpack.c.b16 %v655, %v653
    %v758 = vpack.c.b16 %v656, %v654
    %v759 = vpack.c.b16 %v659, %v657
    %v760 = vpack.c.b16 %v660, %v658
    %v761 = vpack.c.b16 %v663, %v661
    %v762 = vpack.c.b16 %v664, %v662
    %v763 = vpack.c.b16 %v667, %v665
    %v764 = vpack.c.b16 %v668, %v666
    %v765 = vpack.c.b16 %v671, %v669
    %v766 = vpack.c.b16 %v672, %v670
    %v767 = vpack.c.b16 %v675, %v673
    %v768 = vpack.c.b16 %v676, %v674
    %v769 = vpack.c.b16 %v679, %v677
    %v770 = vpack.c.b16 %v680, %v678
    %v771 = vpack.c.b16 %v683, %v681
    %v772 = vpack.c.b16 %v684, %v682
    %v773 = vpack.c.b16 %v687, %v685
    %v774 = vpack.c.b16 %v688, %v686
    %v775 = vpack.c.b16 %v691, %v689
    %v776 = vpack.c.b16 %v692, %v690
    %v777 = vpack.c.b16 %v695, %v693
    %v778 = vpack.c.b16 %v696, %v694
    %v779 = vpack.c.b16 %v699, %v697
    %v780 = vpack.c.b16 %v700, %v698
    %v781 = vpack.c.b16 %v703, %v701
    %v782 = vpack.c.b16 %v704, %v702
    %v783 = vpack.c.b16 %v707, %v705
    %v784 = vpack.c.b16 %v708, %v706
    %v785 = vpack.c.b16 %v711, %v709
    %v786 = vpack.c.b16 %v712, %v710
    %v787 = vpack.c.b16 %v715, %v713
    %v788 = vpack.c.b16 %v716, %v714
    %v789 = vpack.c.b16 %v719, %v717
    %v790 = vpack.c.b16 %v720, %v718
    %v791 = vpack.c.b16 %v723, %v721
    %v792 = vpack.c.b16 %v724, %v722
    %v793 = vpack.c.b16 %v727, %v725
    %v794 = vpack.c.b16 %v728, %v726
    %v795 = vpack.c.b16 %v731, %v729
    %v796 = vpack.c.b16 %v732, %v730
    %861 = vmatprep.subr.bf16.mxu0 %v748
    %862 = vmatpush1.bf16.msra.mxu0 %v747
    %863 = vmatprep.subr.bf16.mxu0 %v746
    %864 = vmatpush1.bf16.msra.mxu0 %v745
    %865 = vmatprep.subr.bf16.mxu0 %v744
    %866 = vmatpush1.bf16.msra.mxu0 %v743
    %867 = vmatprep.subr.bf16.mxu0 %v742
    %868 = vmatpush1.bf16.msra.mxu0 %v741
    %869 = vmatprep.subr.bf16.mxu0 %v740
    %870 = vmatpush1.bf16.msra.mxu0 %v739
    %871 = vmatprep.subr.bf16.mxu0 %v738
    %872 = vmatpush1.bf16.msra.mxu0 %v737
    %873 = vmatprep.subr.bf16.mxu0 %v736
    %874 = vmatpush1.bf16.msra.mxu0 %v735
    %875 = vmatprep.subr.bf16.mxu0 %v734
    %876 = vmatpush1.bf16.msra.mxu0 %v733
    %877 = vmatprep.subr.bf16.mxu0 %v764
    %878 = vmatpush2.bf16.msra.mxu0 %v763
    %879 = vmatprep.subr.bf16.mxu0 %v762
    %880 = vmatpush2.bf16.msra.mxu0 %v761
    %881 = vmatprep.subr.bf16.mxu0 %v760
    %882 = vmatpush2.bf16.msra.mxu0 %v759
    %883 = vmatprep.subr.bf16.mxu0 %v758
    %884 = vmatpush2.bf16.msra.mxu0 %v757
    %885 = vmatprep.subr.bf16.mxu0 %v756
    %886 = vmatpush2.bf16.msra.mxu0 %v755
    %887 = vmatprep.subr.bf16.mxu0 %v754
    %888 = vmatpush2.bf16.msra.mxu0 %v753
    %889 = vmatprep.subr.bf16.mxu0 %v752
    %890 = vmatpush2.bf16.msra.mxu0 %v751
    %891 = vmatprep.subr.bf16.mxu0 %v750
    %892 = vmatpush2.bf16.msra.mxu0 %v749
    %893 = vmatprep.mubr.bf16.mxu0 %v474
    %894 = vmatmul.mubr.bf16.gmra.mxu0 %v473
    %v895 = vpop.f32.mrf.mxu0
    %v896 = vadd.f32 0.0, %v895
    %v897 = vpop.f32.mrf.mxu0
    %v898 = vadd.f32 0.0, %v897
    %v899 = vpop.f32.mrf.mxu0
    %v900 = vpop.f32.mrf.mxu0
    %901 = vdwg.mxu0
    %902 = vmatprep.subr.bf16.mxu0 %v780
    %903 = vmatpush1.bf16.msra.mxu0 %v779
    %904 = vmatprep.subr.bf16.mxu0 %v778
    %905 = vmatpush1.bf16.msra.mxu0 %v777
    %906 = vmatprep.subr.bf16.mxu0 %v776
    %907 = vmatpush1.bf16.msra.mxu0 %v775
    %908 = vmatprep.subr.bf16.mxu0 %v774
    %909 = vmatpush1.bf16.msra.mxu0 %v773
    %910 = vmatprep.subr.bf16.mxu0 %v772
    %911 = vmatpush1.bf16.msra.mxu0 %v771
    %912 = vmatprep.subr.bf16.mxu0 %v770
    %913 = vmatpush1.bf16.msra.mxu0 %v769
    %914 = vmatprep.subr.bf16.mxu0 %v768
    %915 = vmatpush1.bf16.msra.mxu0 %v767
    %916 = vmatprep.subr.bf16.mxu0 %v766
    %917 = vmatpush1.bf16.msra.mxu0 %v765
    %918 = vmatprep.subr.bf16.mxu0 %v796
    %919 = vmatpush2.bf16.msra.mxu0 %v795
    %920 = vmatprep.subr.bf16.mxu0 %v794
    %921 = vmatpush2.bf16.msra.mxu0 %v793
    %922 = vmatprep.subr.bf16.mxu0 %v792
    %923 = vmatpush2.bf16.msra.mxu0 %v791
    %924 = vmatprep.subr.bf16.mxu0 %v790
    %925 = vmatpush2.bf16.msra.mxu0 %v789
    %926 = vmatprep.subr.bf16.mxu0 %v788
    %927 = vmatpush2.bf16.msra.mxu0 %v787
    %928 = vmatprep.subr.bf16.mxu0 %v786
    %929 = vmatpush2.bf16.msra.mxu0 %v785
    %930 = vmatprep.subr.bf16.mxu0 %v784
    %931 = vmatpush2.bf16.msra.mxu0 %v783
    %932 = vmatprep.subr.bf16.mxu0 %v782
    %933 = vmatpush2.bf16.msra.mxu0 %v781
    %934 = vmatprep.mubr.bf16.mxu0 %v476
    %935 = vmatmul.mubr.bf16.gmra.mxu0 %v475
    %v936 = vpop.f32.mrf.mxu0
    %v937 = vadd.f32 %v896, %v936
    %v938 = vpop.f32.mrf.mxu0
    %v939 = vadd.f32 %v898, %v938
    %v940 = vpop.f32.mrf.mxu0
    %v941 = vpop.f32.mrf.mxu0
    %942 = vdwg.mxu0
    %v943 = vpack.c.bf16 %v937, %v937
    %v944 = vpack.c.bf16 %v939, %v939
    %v945 = vld [vmem:[%s4] sm:$0x3]
    %v948 = vunpack.c.l.s4 1966171168
    %v949 = vunpack.c.0.s8 %v948
    %v950 = vlaneseq
    %v951 = vshrl.u32 %v950, 7
    %v952 = vsub.s32 %v949, %v951
    %v953 = vrot.slane %v945, %v952
    %v954 = vcombine.high %v953, %v953
    %v956 = vunpack.c.l.s4 1966171168
    %v957 = vunpack.c.0.s8 %v956
    %v958 = vlaneseq
    %v959 = vshrl.u32 %v958, 7
    %v960 = vsub.s32 %v957, %v959
    %v961 = vrot.slane %v953, %v960
    %v963 = vunpack.c.l.s4 1966171168
    %v964 = vunpack.c.0.s8 %v963
    %v965 = vlaneseq
    %v966 = vshrl.u32 %v965, 7
    %v967 = vsub.s32 %v964, %v966
    %v968 = vrot.slane %v954, %v967
    %v970 = vpack.i.b16 %v961, %v961
    %v972 = vlaneseq
    %v973 = vshrl.u32 %v972, 7
    %v974 = vsub.s32 0, %v973
    %v975 = vrot.slane %v970, %v974
    %v977 = vpack.i.b16 %v968, %v968
    %v979 = vlaneseq
    %v980 = vshrl.u32 %v979, 7
    %v981 = vsub.s32 0, %v980
    %v982 = vrot.slane %v977, %v981
    %v983 = vadd.bf16 %v943, %v975
    %v984 = vadd.bf16 %v944, %v982
    %v985 = vmax.bf16 %v983, 0
    %v986 = vmax.bf16 %v984, 0
    %v987 = vld [vmem:[#allocation11] sm:$0xf]
    %v988 = vld [vmem:[#allocation11 + $0x4] sm:$0xf]
    %v989 = vld [vmem:[#allocation11 + $0x8] sm:$0xf]
    %v990 = vld [vmem:[#allocation11 + $0xc] sm:$0xf]
    %v991 = vld [vmem:[#allocation11 + $0x10] sm:$0xf]
    %v992 = vld [vmem:[#allocation11 + $0x14] sm:$0xf]
    %v993 = vld [vmem:[#allocation11 + $0x18] sm:$0xf]
    %v994 = vld [vmem:[#allocation11 + $0x1c] sm:$0xf]
    %v995 = vld [vmem:[#allocation11 + $0x20] sm:$0xf]
    %v996 = vld [vmem:[#allocation11 + $0x24] sm:$0xf]
    %v997 = vld [vmem:[#allocation11 + $0x28] sm:$0xf]
    %v998 = vld [vmem:[#allocation11 + $0x2c] sm:$0xf]
    %v999 = vld [vmem:[#allocation11 + $0x30] sm:$0xf]
    %v1000 = vld [vmem:[#allocation11 + $0x34] sm:$0xf]
    %v1001 = vld [vmem:[#allocation11 + $0x38] sm:$0xf]
    %v1002 = vld [vmem:[#allocation11 + $0x3c] sm:$0xf]
    %v1003 = vld [vmem:[#allocation11 + $0x40] sm:$0xf]
    %v1004 = vld [vmem:[#allocation11 + $0x44] sm:$0xf]
    %v1005 = vld [vmem:[#allocation11 + $0x48] sm:$0xf]
    %v1006 = vld [vmem:[#allocation11 + $0x4c] sm:$0xf]
    %v1007 = vld [vmem:[#allocation11 + $0x50] sm:$0xf]
    %v1008 = vld [vmem:[#allocation11 + $0x54] sm:$0xf]
    %v1009 = vld [vmem:[#allocation11 + $0x58] sm:$0xf]
    %v1010 = vld [vmem:[#allocation11 + $0x5c] sm:$0xf]
    %v1011 = vld [vmem:[#allocation11 + $0x60] sm:$0xf]
    %v1012 = vld [vmem:[#allocation11 + $0x64] sm:$0xf]
    %v1013 = vld [vmem:[#allocation11 + $0x68] sm:$0xf]
    %v1014 = vld [vmem:[#allocation11 + $0x6c] sm:$0xf]
    %v1015 = vld [vmem:[#allocation11 + $0x70] sm:$0xf]
    %v1016 = vld [vmem:[#allocation11 + $0x74] sm:$0xf]
    %v1017 = vld [vmem:[#allocation11 + $0x78] sm:$0xf]
    %v1018 = vld [vmem:[#allocation11 + $0x7c] sm:$0xf]
    %v1051 = vunpack.c.l.b16 %v987
    %v1052 = vunpack.c.l.b16 %v988
    %v1053 = vunpack.c.l.b16 %v989
    %v1054 = vunpack.c.l.b16 %v990
    %v1055 = vunpack.c.l.b16 %v991
    %v1056 = vunpack.c.l.b16 %v992
    %v1057 = vunpack.c.l.b16 %v993
    %v1058 = vunpack.c.l.b16 %v994
    %v1059 = vunpack.c.l.b16 %v995
    %v1060 = vunpack.c.l.b16 %v996
    %v1061 = vunpack.c.l.b16 %v997
    %v1062 = vunpack.c.l.b16 %v998
    %v1063 = vunpack.c.l.b16 %v999
    %v1064 = vunpack.c.l.b16 %v1000
    %v1065 = vunpack.c.l.b16 %v1001
    %v1066 = vunpack.c.l.b16 %v1002
    %v1067 = vunpack.c.l.b16 %v1003
    %v1068 = vunpack.c.l.b16 %v1004
    %v1069 = vunpack.c.l.b16 %v1005
    %v1070 = vunpack.c.l.b16 %v1006
    %v1071 = vunpack.c.l.b16 %v1007
    %v1072 = vunpack.c.l.b16 %v1008
    %v1073 = vunpack.c.l.b16 %v1009
    %v1074 = vunpack.c.l.b16 %v1010
    %v1075 = vunpack.c.l.b16 %v1011
    %v1076 = vunpack.c.l.b16 %v1012
    %v1077 = vunpack.c.l.b16 %v1013
    %v1078 = vunpack.c.l.b16 %v1014
    %v1079 = vunpack.c.l.b16 %v1015
    %v1080 = vunpack.c.l.b16 %v1016
    %v1081 = vunpack.c.l.b16 %v1017
    %v1082 = vunpack.c.l.b16 %v1018
    %v1083 = vpack.c.b16 %v1052, %v1051
    %v1084 = vpack.c.b16 %v1054, %v1053
    %v1085 = vpack.c.b16 %v1056, %v1055
    %v1086 = vpack.c.b16 %v1058, %v1057
    %v1087 = vpack.c.b16 %v1060, %v1059
    %v1088 = vpack.c.b16 %v1062, %v1061
    %v1089 = vpack.c.b16 %v1064, %v1063
    %v1090 = vpack.c.b16 %v1066, %v1065
    %v1091 = vpack.c.b16 %v1068, %v1067
    %v1092 = vpack.c.b16 %v1070, %v1069
    %v1093 = vpack.c.b16 %v1072, %v1071
    %v1094 = vpack.c.b16 %v1074, %v1073
    %v1095 = vpack.c.b16 %v1076, %v1075
    %v1096 = vpack.c.b16 %v1078, %v1077
    %v1097 = vpack.c.b16 %v1080, %v1079
    %v1098 = vpack.c.b16 %v1082, %v1081
    %1115 = vmatprep.subr.bf16.mxu0 0
    %1116 = vmatpush1.bf16.msra.mxu0 %v1090
    %1117 = vmatprep.subr.bf16.mxu0 0
    %1118 = vmatpush1.bf16.msra.mxu0 %v1089
    %1119 = vmatprep.subr.bf16.mxu0 0
    %1120 = vmatpush1.bf16.msra.mxu0 %v1088
    %1121 = vmatprep.subr.bf16.mxu0 0
    %1122 = vmatpush1.bf16.msra.mxu0 %v1087
    %1123 = vmatprep.subr.bf16.mxu0 0
    %1124 = vmatpush1.bf16.msra.mxu0 %v1086
    %1125 = vmatprep.subr.bf16.mxu0 0
    %1126 = vmatpush1.bf16.msra.mxu0 %v1085
    %1127 = vmatprep.subr.bf16.mxu0 0
    %1128 = vmatpush1.bf16.msra.mxu0 %v1084
    %1129 = vmatprep.subr.bf16.mxu0 0
    %1130 = vmatpush1.bf16.msra.mxu0 %v1083
    %1131 = vmatprep.subr.bf16.mxu0 0
    %1132 = vmatpush2.bf16.msra.mxu0 %v1098
    %1133 = vmatprep.subr.bf16.mxu0 0
    %1134 = vmatpush2.bf16.msra.mxu0 %v1097
    %1135 = vmatprep.subr.bf16.mxu0 0
    %1136 = vmatpush2.bf16.msra.mxu0 %v1096
    %1137 = vmatprep.subr.bf16.mxu0 0
    %1138 = vmatpush2.bf16.msra.mxu0 %v1095
    %1139 = vmatprep.subr.bf16.mxu0 0
    %1140 = vmatpush2.bf16.msra.mxu0 %v1094
    %1141 = vmatprep.subr.bf16.mxu0 0
    %1142 = vmatpush2.bf16.msra.mxu0 %v1093
    %1143 = vmatprep.subr.bf16.mxu0 0
    %1144 = vmatpush2.bf16.msra.mxu0 %v1092
    %1145 = vmatprep.subr.bf16.mxu0 0
    %1146 = vmatpush2.bf16.msra.mxu0 %v1091
    %1147 = vmatprep.mubr.bf16.mxu0 %v986
    %1148 = vmatmul.mubr.bf16.gmra.mxu0 %v985
    %v1149 = vpop.f32.mrf.mxu0
    %v1150 = vadd.f32 0.0, %v1149
    %v1151 = vpop.f32.mrf.mxu0
    %v1152 = vpop.f32.mrf.mxu0
    %v1153 = vpop.f32.mrf.mxu0
    %1154 = vdwg.mxu0
    %v1155 = vpack.c.bf16 %v1150, %v1150
    %v1156 = vld [vmem:[%s6] sm:$0x1]
    %v1158 = vpack.i.b16 %v1156, %v1156
    %v1160 = vlaneseq
    %v1161 = vshrl.u32 %v1160, 7
    %v1162 = vsub.s32 0, %v1161
    %v1163 = vrot.slane %v1158, %v1162
    %v1164 = vadd.bf16 %v1155, %v1163
    %v1165 = vmax.bf16 %v1164, 0
    %v1166 = vld [vmem:[#allocation12] sm:$0xf]
    %v1167 = vld [vmem:[#allocation12 + $0x4] sm:$0xf]
    %v1168 = vld [vmem:[#allocation12 + $0x8] sm:$0xf]
    %v1169 = vld [vmem:[#allocation12 + $0xc] sm:$0xf]
    %v1170 = vld [vmem:[#allocation12 + $0x10] sm:$0xf]
    %v1171 = vld [vmem:[#allocation12 + $0x14] sm:$0xf]
    %v1172 = vld [vmem:[#allocation12 + $0x18] sm:$0xf]
    %v1173 = vld [vmem:[#allocation12 + $0x1c] sm:$0xf]
    %v1174 = vld [vmem:[#allocation12 + $0x20] sm:$0xf]
    %v1175 = vld [vmem:[#allocation12 + $0x24] sm:$0xf]
    %v1176 = vld [vmem:[#allocation12 + $0x28] sm:$0xf]
    %v1177 = vld [vmem:[#allocation12 + $0x2c] sm:$0xf]
    %v1178 = vld [vmem:[#allocation12 + $0x30] sm:$0xf]
    %v1179 = vld [vmem:[#allocation12 + $0x34] sm:$0xf]
    %v1180 = vld [vmem:[#allocation12 + $0x38] sm:$0xf]
    %v1181 = vld [vmem:[#allocation12 + $0x3c] sm:$0xf]
    %v1198 = vunpack.c.l.b16 %v1166
    %v1199 = vunpack.c.l.b16 %v1167
    %v1200 = vunpack.c.l.b16 %v1168
    %v1201 = vunpack.c.l.b16 %v1169
    %v1202 = vunpack.c.l.b16 %v1170
    %v1203 = vunpack.c.l.b16 %v1171
    %v1204 = vunpack.c.l.b16 %v1172
    %v1205 = vunpack.c.l.b16 %v1173
    %v1206 = vunpack.c.l.b16 %v1174
    %v1207 = vunpack.c.l.b16 %v1175
    %v1208 = vunpack.c.l.b16 %v1176
    %v1209 = vunpack.c.l.b16 %v1177
    %v1210 = vunpack.c.l.b16 %v1178
    %v1211 = vunpack.c.l.b16 %v1179
    %v1212 = vunpack.c.l.b16 %v1180
    %v1213 = vunpack.c.l.b16 %v1181
    %v1214 = vpack.c.b16 %v1199, %v1198
    %v1215 = vpack.c.b16 %v1201, %v1200
    %v1216 = vpack.c.b16 %v1203, %v1202
    %v1217 = vpack.c.b16 %v1205, %v1204
    %v1218 = vpack.c.b16 %v1207, %v1206
    %v1219 = vpack.c.b16 %v1209, %v1208
    %v1220 = vpack.c.b16 %v1211, %v1210
    %v1221 = vpack.c.b16 %v1213, %v1212
    %1230 = vmatprep.subr.bf16.mxu0 0
    %1231 = vmatpush1.bf16.msra.mxu0 %v1221
    %1232 = vmatprep.subr.bf16.mxu0 0
    %1233 = vmatpush1.bf16.msra.mxu0 %v1220
    %1234 = vmatprep.subr.bf16.mxu0 0
    %1235 = vmatpush1.bf16.msra.mxu0 %v1219
    %1236 = vmatprep.subr.bf16.mxu0 0
    %1237 = vmatpush1.bf16.msra.mxu0 %v1218
    %1238 = vmatprep.subr.bf16.mxu0 0
    %1239 = vmatpush1.bf16.msra.mxu0 %v1217
    %1240 = vmatprep.subr.bf16.mxu0 0
    %1241 = vmatpush1.bf16.msra.mxu0 %v1216
    %1242 = vmatprep.subr.bf16.mxu0 0
    %1243 = vmatpush1.bf16.msra.mxu0 %v1215
    %1244 = vmatprep.subr.bf16.mxu0 0
    %1245 = vmatpush1.bf16.msra.mxu0 %v1214
    %1246 = vmatprep.subr.bf16.mxu0 0
    %1247 = vmatpush2.bf16.msra.mxu0 0
    %1248 = vmatprep.subr.bf16.mxu0 0
    %1249 = vmatpush2.bf16.msra.mxu0 0
    %1250 = vmatprep.subr.bf16.mxu0 0
    %1251 = vmatpush2.bf16.msra.mxu0 0
    %1252 = vmatprep.subr.bf16.mxu0 0
    %1253 = vmatpush2.bf16.msra.mxu0 0
    %1254 = vmatprep.subr.bf16.mxu0 0
    %1255 = vmatpush2.bf16.msra.mxu0 0
    %1256 = vmatprep.subr.bf16.mxu0 0
    %1257 = vmatpush2.bf16.msra.mxu0 0
    %1258 = vmatprep.subr.bf16.mxu0 0
    %1259 = vmatpush2.bf16.msra.mxu0 0
    %1260 = vmatprep.subr.bf16.mxu0 0
    %1261 = vmatpush2.bf16.msra.mxu0 0
    %1262 = vmatprep.mubr.bf16.mxu0 0
    %1263 = vmatmul.mubr.bf16.gmra.mxu0 %v1165
    %v1264 = vpop.f32.mrf.mxu0
    %v1265 = vadd.f32 0.0, %v1264
    %v1266 = vpop.f32.mrf.mxu0
    %v1267 = vpop.f32.mrf.mxu0
    %v1268 = vpop.f32.mrf.mxu0
    %1269 = vdwg.mxu0
    %v1270 = vpack.c.bf16 %v1265, %v1265
    %v1271 = vld [vmem:[%s8] sm:$0x1]
    %v1273 = vpack.i.b16 %v1271, %v1271
    %v1275 = vlaneseq
    %v1276 = vshrl.u32 %v1275, 7
    %v1277 = vsub.s32 0, %v1276
    %v1278 = vrot.slane %v1273, %v1277
    %v1279 = vadd.bf16 %v1270, %v1278
    %v1280 = vmax.bf16 %v1279, 0
    %v1281 = vld [vmem:[#allocation14] sm:$0xf]
    %v1282 = vld [vmem:[#allocation14 + $0x4] sm:$0xf]
    %v1283 = vld [vmem:[#allocation14 + $0x8] sm:$0xf]
    %v1284 = vld [vmem:[#allocation14 + $0xc] sm:$0xf]
    %v1285 = vld [vmem:[#allocation14 + $0x10] sm:$0xf]
    %v1286 = vld [vmem:[#allocation14 + $0x14] sm:$0xf]
    %v1287 = vld [vmem:[#allocation14 + $0x18] sm:$0xf]
    %v1288 = vld [vmem:[#allocation14 + $0x1c] sm:$0xf]
    %v1289 = vld [vmem:[#allocation14 + $0x20] sm:$0xf]
    %v1290 = vld [vmem:[#allocation14 + $0x24] sm:$0xf]
    %v1291 = vld [vmem:[#allocation14 + $0x28] sm:$0xf]
    %v1292 = vld [vmem:[#allocation14 + $0x2c] sm:$0xf]
    %v1293 = vld [vmem:[#allocation14 + $0x30] sm:$0xf]
    %v1294 = vld [vmem:[#allocation14 + $0x34] sm:$0xf]
    %v1295 = vld [vmem:[#allocation14 + $0x38] sm:$0xf]
    %v1296 = vld [vmem:[#allocation14 + $0x3c] sm:$0xf]
    %v1297 = vld [vmem:[%s10] sm:$0x1]
    %v1298 = vunpack.c.l.bf16 %v1297
    %v1299 = vlaneseq
    %v1300 = vshrl.u32 %v1299, 7
    %v1301 = vsub.s32 0, %v1300
    %v1302 = vrot.slane %v1298, %v1301
    %v1319 = vunpack.c.l.b16 %v1281
    %v1320 = vunpack.c.l.b16 %v1282
    %v1321 = vunpack.c.l.b16 %v1283
    %v1322 = vunpack.c.l.b16 %v1284
    %v1323 = vunpack.c.l.b16 %v1285
    %v1324 = vunpack.c.l.b16 %v1286
    %v1325 = vunpack.c.l.b16 %v1287
    %v1326 = vunpack.c.l.b16 %v1288
    %v1327 = vunpack.c.l.b16 %v1289
    %v1328 = vunpack.c.l.b16 %v1290
    %v1329 = vunpack.c.l.b16 %v1291
    %v1330 = vunpack.c.l.b16 %v1292
    %v1331 = vunpack.c.l.b16 %v1293
    %v1332 = vunpack.c.l.b16 %v1294
    %v1333 = vunpack.c.l.b16 %v1295
    %v1334 = vunpack.c.l.b16 %v1296
    %v1335 = vpack.c.b16 %v1320, %v1319
    %v1336 = vpack.c.b16 %v1322, %v1321
    %v1337 = vpack.c.b16 %v1324, %v1323
    %v1338 = vpack.c.b16 %v1326, %v1325
    %v1339 = vpack.c.b16 %v1328, %v1327
    %v1340 = vpack.c.b16 %v1330, %v1329
    %v1341 = vpack.c.b16 %v1332, %v1331
    %v1342 = vpack.c.b16 %v1334, %v1333
    %1351 = vmatprep.subr.bf16.mxu0 0
    %1352 = vmatpush1.bf16.msra.mxu0 %v1342
    %1353 = vmatprep.subr.bf16.mxu0 0
    %1354 = vmatpush1.bf16.msra.mxu0 %v1341
    %1355 = vmatprep.subr.bf16.mxu0 0
    %1356 = vmatpush1.bf16.msra.mxu0 %v1340
    %1357 = vmatprep.subr.bf16.mxu0 0
    %1358 = vmatpush1.bf16.msra.mxu0 %v1339
    %1359 = vmatprep.subr.bf16.mxu0 0
    %1360 = vmatpush1.bf16.msra.mxu0 %v1338
    %1361 = vmatprep.subr.bf16.mxu0 0
    %1362 = vmatpush1.bf16.msra.mxu0 %v1337
    %1363 = vmatprep.subr.bf16.mxu0 0
    %1364 = vmatpush1.bf16.msra.mxu0 %v1336
    %1365 = vmatprep.subr.bf16.mxu0 0
    %1366 = vmatpush1.bf16.msra.mxu0 %v1335
    %1367 = vmatprep.subr.bf16.mxu0 0
    %1368 = vmatpush2.bf16.msra.mxu0 0
    %1369 = vmatprep.subr.bf16.mxu0 0
    %1370 = vmatpush2.bf16.msra.mxu0 0
    %1371 = vmatprep.subr.bf16.mxu0 0
    %1372 = vmatpush2.bf16.msra.mxu0 0
    %1373 = vmatprep.subr.bf16.mxu0 0
    %1374 = vmatpush2.bf16.msra.mxu0 0
    %1375 = vmatprep.subr.bf16.mxu0 0
    %1376 = vmatpush2.bf16.msra.mxu0 0
    %1377 = vmatprep.subr.bf16.mxu0 0
    %1378 = vmatpush2.bf16.msra.mxu0 0
    %1379 = vmatprep.subr.bf16.mxu0 0
    %1380 = vmatpush2.bf16.msra.mxu0 0
    %1381 = vmatprep.subr.bf16.mxu0 0
    %1382 = vmatpush2.bf16.msra.mxu0 0
    %1383 = vmatprep.mubr.bf16.mxu0 0
    %1384 = vmatmul.mubr.bf16.gmra.mxu0 %v1280
    %v1385 = vpop.f32.mrf.mxu0
    %v1386 = vadd.f32 %v1302, %v1385
    %v1387 = vpop.f32.mrf.mxu0
    %v1388 = vpop.f32.mrf.mxu0
    %v1389 = vpop.f32.mrf.mxu0
    %1390 = vdwg.mxu0
    %v1391 = vpack.c.bf16 %v1386, %v1386
    %1392 = vst [vmem:[#allocation15] sm:$0xf] %v1391
    // Predicated region
    $region74: #{tpu_custom_call.1} parent=1 // pred_check
      _
    $region75: #{tpu_custom_call.1} parent=1 // pred_check_branch
      %1394 = sbr.rel (0) target = $region77
    $region76: #{tpu_custom_call.1} parent=1 // pred_region
      %s1396 = ssub.s32 64, 64
      %1397 = vsyncadd [#allocation5], %s1396
      %s1399 = sshll.u32 [#allocation15], 4
      %s1400 = int_to_ptr.vmem [resolvable:$true] %s1399
      %1402 = dma.vmem_to_hbm [thread:$0]  %s1400, 64, %s11, [#allocation5]
    $region77: #{tpu_custom_call.1} parent=1 // pred_fallthru
      _
    // Predicated region
    $region78: #{tpu_custom_call.1} parent=1 // pred_check
      _
    $region79: #{tpu_custom_call.1} parent=1 // pred_check_branch
      %1404 = sbr.rel (0) target = $region81
    $region80: #{tpu_custom_call.1} parent=1 // pred_region
      %1405 = dma.done [#allocation5], 64
    $region81: #{tpu_custom_call.1} parent=1 // pred_fallthru
      _
    %1406 = vsyncpa [#allocation4], 1
    %1407 = vsyncpa [#allocation7], 1
    %1408 = vsyncpa [#allocation10], 1
    %1409 = vsyncpa [#allocation13], 1
    %1410 = vsyncpa [#allocation5], 1

</llo_original>
